<compile_context>
chip_gen: v7x
topology: tpu7x:2x2x1
jax: 0.10.0
libtpu: 0.0.40
codegen_flags: <defaults>
</compile_context>

<pallas_src>
import functools

import jax
import jax.numpy as jnp
from jax import lax
from jax.experimental import pallas as pl
from jax.experimental.pallas import tpu as pltpu


LN_EPS = 1e-5


def _round_up(x, m):
    return (x + m - 1) // m * m


def _patch_embed_kernel(p_ref, w_ref, params_ref, o_ref):
    # p_ref:      (TM, K_pad) bf16 im2col patches tile
    # w_ref:      (K_pad, N)  bf16 conv weight as a matrix (zero-padded rows)
    # params_ref: (3, N)      f32 rows = [conv bias, LN gamma, LN beta]
    # o_ref:      (TM, N)     output tile (f32 or bf16)
    y = jnp.dot(p_ref[...], w_ref[...], preferred_element_type=jnp.float32)
    y = y + params_ref[0:1, :]                                   # conv bias
    mean = jnp.mean(y, axis=-1, keepdims=True)
    centered = y - mean
    var = jnp.mean(centered * centered, axis=-1, keepdims=True)
    y_norm = centered * lax.rsqrt(var + LN_EPS)
    o_ref[...] = (y_norm * params_ref[1:2, :] + params_ref[2:3, :]).astype(o_ref.dtype)


@functools.partial(jax.jit,
                   static_argnames=("patch_size", "stride", "out_dtype", "block_m"))
def overlap_patch_embed(x_nchw, conv_w, conv_b, ln_gamma, ln_beta,
                        patch_size=7, stride=4, out_dtype=jnp.float32,
                        block_m=None):
    """x_nchw: (B, C, H, W).  Returns (B, Hout, Wout, embed_dim) in out_dtype."""
    B, C, H, W = x_nchw.shape
    embed_dim = conv_w.shape[0]
    KH = KW = patch_size
    pad = patch_size // 2

    Hout = (H + 2 * pad - KH) // stride + 1
    Wout = (W + 2 * pad - KW) // stride + 1

    M = B * Hout * Wout
    K = C * KH * KW
    K_pad = _round_up(K, 32)          # clean bf16 sublane layout for the weight
    N = embed_dim

    # ---- im2col (host/XLA side), built in a single copy in its final layout:
    #   patches[b, ho, wo, (kh*KW + kw)*C + c] = xpad[b, ho*s + kh, wo*s + kw, c]
    # Feature order is (kh, kw, c); the (tiny) weight matrix is reordered to
    # match.  Emitted in bf16 to halve the dominant HBM stream.
    xp = jnp.pad(jnp.transpose(x_nchw, (0, 2, 3, 1)).astype(jnp.bfloat16),
                 ((0, 0), (pad, pad), (pad, pad), (0, 0)))        # (B, Hp, Wp, C)
    parts = []
    for kh in range(KH):
        for kw in range(KW):
            parts.append(xp[:, kh:kh + stride * (Hout - 1) + 1:stride,
                            kw:kw + stride * (Wout - 1) + 1:stride, :])
    if K_pad != K:
        # fold the K zero-padding into the same concatenate (no extra pad copy)
        parts.append(jnp.zeros((B, Hout, Wout, K_pad - K), jnp.bfloat16))
    patches = jnp.concatenate(parts, axis=-1).reshape(M, K_pad)

    # conv weight (N, C, KH, KW) -> (KH, KW, C, N) -> (K_pad, N), bf16
    w_mat = jnp.transpose(conv_w, (2, 3, 1, 0)).reshape(K, N).astype(jnp.bfloat16)
    if K_pad != K:
        w_mat = jnp.pad(w_mat, ((0, K_pad - K), (0, 0)))

    # fuse the three small per-channel vectors into one (3, N) f32 input
    params = jnp.stack([conv_b.astype(jnp.float32),
                        ln_gamma.astype(jnp.float32),
                        ln_beta.astype(jnp.float32)], axis=0)

    out_bytes = jnp.dtype(out_dtype).itemsize

    # ---- tile policy ------------------------------------------------------
    # VMEM working set per output row, counting lane padding (minor dim is
    # rounded up to 128 lanes in VMEM), double-buffered patches/output tiles
    # and ~4 live f32 (TM, N) LayerNorm temporaries.
    K_lane = _round_up(K_pad, 128)
    N_lane = _round_up(N, 128)
    per_row = (2 * K_lane * 2            # double-buffered bf16 patches tile
               + 2 * N_lane * out_bytes  # double-buffered output tile
               + 4 * N_lane * 4)         # f32 LN temporaries (y, centered, norm, cast)
    fixed = (2 * _round_up(K_pad, 16) * N_lane * 2   # weight (conservatively 2x)
             + 2 * 8 * N_lane * 4)                   # params
    if block_m is None:
        budget = 28 * 1024 * 1024        # working-set target, << 48 MiB limit below
        block_m = max(256, ((budget - fixed) // per_row) // 256 * 256)

    M8 = _round_up(M, 8)
    # >= 4 grid steps when the problem is big enough (2 per v7x TensorCore and
    # something for the BlockSpec pipeline to prefetch); TM multiple of 256
    # when tiled, never larger than the (8-padded) problem.
    TM = min(block_m, _round_up(pl.cdiv(M8, 4), 256))
    TM = max(8, min(TM, M8))

    grid = (pl.cdiv(M, TM),)

    # ---- Pallas kernel: fused matmul + bias + LayerNorm, pipelined over M --
    out = pl.pallas_call(
        _patch_embed_kernel,
        out_shape=jax.ShapeDtypeStruct((M, N), out_dtype),
        grid=grid,
        in_specs=[
            pl.BlockSpec((TM, K_pad), lambda i: (i, 0)),   # patches tile (streamed)
            pl.BlockSpec((K_pad, N), lambda i: (0, 0)),    # weight (resident)
            pl.BlockSpec((3, N), lambda i: (0, 0)),        # bias / gamma / beta
        ],
        out_specs=pl.BlockSpec((TM, N), lambda i: (i, 0)),
        compiler_params=pltpu.CompilerParams(
            dimension_semantics=("parallel",),             # megacore-shard M on v7x
            vmem_limit_bytes=48 * 1024 * 1024),            # <= 48 MiB (v7x phys 64)
    )(patches, w_mat, params)

    return out.reshape(B, Hout, Wout, N)


def _reference(x_nchw, conv_w, conv_b, ln_gamma, ln_beta, patch_size=7, stride=4):
    pad = patch_size // 2
    y = lax.conv_general_dilated(
        x_nchw.astype(jnp.float32), conv_w.astype(jnp.float32),
        window_strides=(stride, stride),
        padding=((pad, pad), (pad, pad)),
        dimension_numbers=("NCHW", "OIHW", "NCHW"),
        precision=lax.Precision.HIGHEST)
    y = y + conv_b.reshape(1, -1, 1, 1)
    y = jnp.transpose(y, (0, 2, 3, 1))            # NHWC
    mean = jnp.mean(y, axis=-1, keepdims=True)
    var = jnp.mean((y - mean) ** 2, axis=-1, keepdims=True)
    return (y - mean) * lax.rsqrt(var + LN_EPS) * ln_gamma + ln_beta


if __name__ == "__main__":
    # Small shapes consistent with the module: patch_size=7, stride=4
    B, C, H, W = 2, 4, 16, 16
    embed_dim = 32
    patch_size, stride = 7, 4

    key = jax.random.PRNGKey(0)
    k1, k2, k3 = jax.random.split(key, 3)

    x = jax.random.normal(k1, (B, C, H, W), dtype=jnp.float32)
    fan_in = C * patch_size * patch_size
    conv_w = jax.random.normal(k2, (embed_dim, C, patch_size, patch_size),
                               dtype=jnp.float32) * (1.0 / jnp.sqrt(fan_in))
    conv_b = jax.random.normal(k3, (embed_dim,), dtype=jnp.float32) * 0.02
    ln_gamma = jnp.ones((embed_dim,), dtype=jnp.float32)
    ln_beta = jnp.zeros((embed_dim,), dtype=jnp.float32)

    out = overlap_patch_embed(x, conv_w, conv_b, ln_gamma, ln_beta,
                              patch_size=patch_size, stride=stride)
    out = jax.block_until_ready(out)

    # Reference uses the same bf16-rounded inputs as the kernel's bf16 matmul
    # (products are then exact in f32), so only accumulation order differs.
    x_q = x.astype(jnp.bfloat16).astype(jnp.float32)
    w_q = conv_w.astype(jnp.bfloat16).astype(jnp.float32)
    ref = _reference(x_q, w_q, conv_b, ln_gamma, ln_beta,
                     patch_size=patch_size, stride=stride)

    assert out.shape == (B, 4, 4, embed_dim), out.shape
    assert jnp.allclose(out, ref, atol=5e-3, rtol=5e-3), "mismatch vs reference"

    # bf16-output variant (halves the output HBM stream for bf16 pipelines);
    # only the final cast differs from the f32 result.
    out_bf16 = overlap_patch_embed(x, conv_w, conv_b, ln_gamma, ln_beta,
                                   patch_size=patch_size, stride=stride,
                                   out_dtype=jnp.bfloat16)
    out_bf16 = jax.block_until_ready(out_bf16)
    assert out_bf16.dtype == jnp.bfloat16
    assert jnp.allclose(out_bf16.astype(jnp.float32), out, atol=5e-2, rtol=5e-2), \
        "bf16 output mismatch vs f32 output"

    print("KERNEL_OK")
</pallas_src>

<mosaic_0001>
module attributes {stable_mosaic.version = 11 : i64} {
  func.func @_patch_embed_kernel(%arg0: i32, %arg1: memref<32x224xbf16, #tpu.memory_space<vmem>>, %arg2: memref<224x32xbf16, #tpu.memory_space<vmem>>, %arg3: memref<3x32xf32, #tpu.memory_space<vmem>>, %arg4: memref<32x32xf32, #tpu.memory_space<vmem>>) attributes {dimension_semantics = [#tpu.dimension_semantics<parallel>], iteration_bounds = array<i64: 1>, scalar_prefetch = 0 : i64, scratch_operands = 0 : i64, tpu.core_type = #tpu.core_type<tc>, window_params = [{transform_indices = @transform_0, window_bounds = array<i64: 32, 224>}, {pipeline_mode = #tpu.pipeline_mode<synchronous>, transform_indices = @transform_1, window_bounds = array<i64: 224, 32>}, {pipeline_mode = #tpu.pipeline_mode<synchronous>, transform_indices = @transform_2, window_bounds = array<i64: 3, 32>}, {transform_indices = @transform_3, window_bounds = array<i64: 32, 32>}]} {
    %c0 = arith.constant 0 : index
    %c0_0 = arith.constant 0 : index
    %0 = vector.load %arg1[%c0, %c0_0] : memref<32x224xbf16, #tpu.memory_space<vmem>>, vector<32x224xbf16>
    %c0_1 = arith.constant 0 : index
    %c0_2 = arith.constant 0 : index
    %1 = vector.load %arg2[%c0_1, %c0_2] : memref<224x32xbf16, #tpu.memory_space<vmem>>, vector<224x32xbf16>
    %cst = arith.constant dense<0.000000e+00> : vector<32x32xf32>
    %2 = tpu.matmul %0, %1, %cst {dimension_numbers = #tpu.dot_dimension_numbers<[1], [0], [0], [1], [0, 0, 1, 1], [], []>} : vector<32x224xbf16>, vector<224x32xbf16>, vector<32x32xf32> -> vector<32x32xf32>
    %c0_3 = arith.constant 0 : index
    %c0_4 = arith.constant 0 : index
    %3 = vector.load %arg3[%c0_3, %c0_4] : memref<3x32xf32, #tpu.memory_space<vmem>>, vector<1x32xf32>
    %4 = vector.broadcast %3 : vector<1x32xf32> to vector<32x32xf32>
    %5 = arith.addf %2, %4 : vector<32x32xf32>
    %cst_5 = arith.constant dense<0.000000e+00> : vector<32xf32>
    %6 = vector.multi_reduction <add>, %5, %cst_5 [1] : vector<32x32xf32> to vector<32xf32>
    %7 = vector.shape_cast %6 : vector<32xf32> to vector<32x1xf32>
    %cst_6 = arith.constant 3.200000e+01 : f32
    %8 = vector.broadcast %cst_6 : f32 to vector<32x1xf32>
    %9 = arith.divf %7, %8 : vector<32x1xf32>
    %10 = vector.broadcast %9 : vector<32x1xf32> to vector<32x32xf32>
    %11 = arith.subf %5, %10 : vector<32x32xf32>
    %12 = arith.mulf %11, %11 : vector<32x32xf32>
    %cst_7 = arith.constant dense<0.000000e+00> : vector<32xf32>
    %13 = vector.multi_reduction <add>, %12, %cst_7 [1] : vector<32x32xf32> to vector<32xf32>
    %14 = vector.shape_cast %13 : vector<32xf32> to vector<32x1xf32>
    %cst_8 = arith.constant 3.200000e+01 : f32
    %15 = vector.broadcast %cst_8 : f32 to vector<32x1xf32>
    %16 = arith.divf %14, %15 : vector<32x1xf32>
    %cst_9 = arith.constant 9.99999974E-6 : f32
    %17 = vector.broadcast %cst_9 : f32 to vector<32x1xf32>
    %18 = arith.addf %16, %17 : vector<32x1xf32>
    %19 = math.rsqrt %18 : vector<32x1xf32>
    %20 = vector.broadcast %19 : vector<32x1xf32> to vector<32x32xf32>
    %21 = arith.mulf %11, %20 : vector<32x32xf32>
    %c1 = arith.constant 1 : index
    %c0_10 = arith.constant 0 : index
    %22 = vector.load %arg3[%c1, %c0_10] : memref<3x32xf32, #tpu.memory_space<vmem>>, vector<1x32xf32>
    %23 = vector.broadcast %22 : vector<1x32xf32> to vector<32x32xf32>
    %24 = arith.mulf %21, %23 : vector<32x32xf32>
    %c2 = arith.constant 2 : index
    %c0_11 = arith.constant 0 : index
    %25 = vector.load %arg3[%c2, %c0_11] : memref<3x32xf32, #tpu.memory_space<vmem>>, vector<1x32xf32>
    %26 = vector.broadcast %25 : vector<1x32xf32> to vector<32x32xf32>
    %27 = arith.addf %24, %26 : vector<32x32xf32>
    %c0_12 = arith.constant 0 : index
    %c0_13 = arith.constant 0 : index
    %28 = vector.load %arg4[%c0_12, %c0_13] : memref<32x32xf32, #tpu.memory_space<vmem>>, vector<32x32xf32>
    tpu.vector_store %arg4[%c0_12, %c0_13], %27 {strides = array<i32>} : memref<32x32xf32, #tpu.memory_space<vmem>>, vector<32x32xf32>,
    return
  }
  func.func @transform_0(%arg0: i32) -> (i32, i32) {
    %c0_i32 = arith.constant 0 : i32
    %c0_i32_0 = arith.constant 0 : i32
    return %arg0, %c0_i32 : i32, i32
  }
  func.func @transform_1(%arg0: i32) -> (i32, i32) {
    %c0_i32 = arith.constant 0 : i32
    %c0_i32_0 = arith.constant 0 : i32
    %c0_i32_1 = arith.constant 0 : i32
    return %c0_i32, %c0_i32_0 : i32, i32
  }
  func.func @transform_2(%arg0: i32) -> (i32, i32) {
    %c0_i32 = arith.constant 0 : i32
    %c0_i32_0 = arith.constant 0 : i32
    %c0_i32_1 = arith.constant 0 : i32
    return %c0_i32, %c0_i32_0 : i32, i32
  }
  func.func @transform_3(%arg0: i32) -> (i32, i32) {
    %c0_i32 = arith.constant 0 : i32
    %c0_i32_0 = arith.constant 0 : i32
    return %arg0, %c0_i32 : i32, i32
  }
}

</mosaic_0001>

<llo_original>
// kernel: overlap_patch_embed.1
$region0: #{overlap_patch_embed.1}
  #allocation0 [shape = 'u32[]', space=smem, size = 0x4, offset = 0x4, fixed_abs, tag = 'smem constant byte address 0x4 - core index']
  #allocation1 [shape = 'u32[144,128]{1,0:T(1,128)}', space=vmem, size = 0x12000, scoped, tag = 'internal scratch']
  %s0 = inlined_call_operand.vmem [shape: bf16[32,224], index: 0, kind: input, shape index: {}]
  %s1 = inlined_call_operand.vmem [shape: bf16[224,32], index: 1, kind: input, shape index: {}]
  %s2 = inlined_call_operand.vmem [shape: f32[3,32], index: 2, kind: input, shape index: {}]
  %s3 = inlined_call_operand.hbm [shape: f32[32,32], index: 3, kind: output, shape index: {}]
  %s4 = sld [smem:[#allocation0]]
  $region22: #{overlap_patch_embed.1} parent=0
    _
  %s6 = ssub.s32 1, %s4
  %s7 = scalar_select 0, %s6, %s4
  $region1: #{overlap_patch_embed.1} parent=0
    #allocation2 [shape = 'u8[16384]{0}', space=vmem, size = 0x4000, scoped, tag = 'output window, operand 0, single buffered']
    #allocation3 [shape = 's32[1]{0}', space=sflag, size = 0x4, scoped, tag = 'scoped memory for overlap_patch_embed.1']
    %8 = vsyncpa [#allocation3], 0
    // Predicated region
    $region2: #{overlap_patch_embed.1} parent=1 // pred_check
      _
    $region3: #{overlap_patch_embed.1} parent=1 // pred_check_branch
      %10 = sbr.rel (0) target = $region5
    $region4: #{overlap_patch_embed.1} parent=1 // pred_region
      _
    $region5: #{overlap_patch_embed.1} parent=1 // pred_fallthru
      _
    // Predicated region
    $region6: #{overlap_patch_embed.1} parent=1 // pred_check
      _
    $region7: #{overlap_patch_embed.1} parent=1 // pred_check_branch
      %12 = sbr.rel (0) target = $region9
    $region8: #{overlap_patch_embed.1} parent=1 // pred_region
      _
    $region9: #{overlap_patch_embed.1} parent=1 // pred_fallthru
      _
    // Predicated region
    $region10: #{overlap_patch_embed.1} parent=1 // pred_check
      _
    $region11: #{overlap_patch_embed.1} parent=1 // pred_check_branch
      %14 = sbr.rel (0) target = $region13
    $region12: #{overlap_patch_embed.1} parent=1 // pred_region
      _
    $region13: #{overlap_patch_embed.1} parent=1 // pred_fallthru
      _
    %v16 = vld [vmem:[%s0] sm:$0xff]
    %v17 = vld [vmem:[%s0 + $0x8] sm:$0xff]
    %v18 = vld [vmem:[%s0 + $0x10] sm:$0xff]
    %v19 = vld [vmem:[%s0 + $0x18] sm:$0xff]
    %v20 = vld [vmem:[%s1] sm:$0xf]
    %v21 = vld [vmem:[%s1 + $0x4] sm:$0xf]
    %v22 = vld [vmem:[%s1 + $0x8] sm:$0xf]
    %v23 = vld [vmem:[%s1 + $0xc] sm:$0xf]
    %v24 = vld [vmem:[%s1 + $0x10] sm:$0xf]
    %v25 = vld [vmem:[%s1 + $0x14] sm:$0xf]
    %v26 = vld [vmem:[%s1 + $0x18] sm:$0xf]
    %v27 = vld [vmem:[%s1 + $0x1c] sm:$0xf]
    %v28 = vld [vmem:[%s1 + $0x20] sm:$0xf]
    %v29 = vld [vmem:[%s1 + $0x24] sm:$0xf]
    %v30 = vld [vmem:[%s1 + $0x28] sm:$0xf]
    %v31 = vld [vmem:[%s1 + $0x2c] sm:$0xf]
    %v32 = vld [vmem:[%s1 + $0x30] sm:$0xf]
    %v33 = vld [vmem:[%s1 + $0x34] sm:$0xf]
    %v34 = vld [vmem:[%s1 + $0x38] sm:$0xf]
    %v35 = vld [vmem:[%s1 + $0x3c] sm:$0xf]
    %v36 = vld [vmem:[%s1 + $0x40] sm:$0xf]
    %v37 = vld [vmem:[%s1 + $0x44] sm:$0xf]
    %v38 = vld [vmem:[%s1 + $0x48] sm:$0xf]
    %v39 = vld [vmem:[%s1 + $0x4c] sm:$0xf]
    %v40 = vld [vmem:[%s1 + $0x50] sm:$0xf]
    %v41 = vld [vmem:[%s1 + $0x54] sm:$0xf]
    %v42 = vld [vmem:[%s1 + $0x58] sm:$0xf]
    %v43 = vld [vmem:[%s1 + $0x5c] sm:$0xf]
    %v44 = vld [vmem:[%s1 + $0x60] sm:$0xf]
    %v45 = vld [vmem:[%s1 + $0x64] sm:$0xf]
    %v46 = vld [vmem:[%s1 + $0x68] sm:$0xf]
    %v47 = vld [vmem:[%s1 + $0x6c] sm:$0xf]
    %v48 = vld [vmem:[%s2] sm:$0x1]
    %v49 = vlaneseq
    %v50 = vshrl.u32 %v49, 7
    %v51 = vsub.s32 0, %v50
    %v52 = vrot.slane %v48, %v51
    %v57 = vunpack.c.l.b16 %v16
    %v58 = vunpack.c.h.b16 %v16
    %v59 = vunpack.c.l.b16 %v17
    %v60 = vunpack.c.h.b16 %v17
    %v61 = vunpack.c.l.b16 %v18
    %v62 = vunpack.c.h.b16 %v18
    %v63 = vunpack.c.l.b16 %v19
    %v64 = vunpack.c.h.b16 %v19
    %v65 = vpack.c.b16 %v59, %v57
    %v66 = vpack.c.b16 %v60, %v58
    %v67 = vpack.c.b16 %v63, %v61
    %v68 = vpack.c.b16 %v64, %v62
    %v99 = vunpack.c.l.b16 %v20
    %v100 = vunpack.c.l.b16 %v21
    %v101 = vunpack.c.l.b16 %v22
    %v102 = vunpack.c.l.b16 %v23
    %v103 = vunpack.c.l.b16 %v24
    %v104 = vunpack.c.l.b16 %v25
    %v105 = vunpack.c.l.b16 %v26
    %v106 = vunpack.c.l.b16 %v27
    %v107 = vunpack.c.l.b16 %v28
    %v108 = vunpack.c.l.b16 %v29
    %v109 = vunpack.c.l.b16 %v30
    %v110 = vunpack.c.l.b16 %v31
    %v111 = vunpack.c.l.b16 %v32
    %v112 = vunpack.c.l.b16 %v33
    %v113 = vunpack.c.l.b16 %v34
    %v114 = vunpack.c.l.b16 %v35
    %v115 = vunpack.c.l.b16 %v36
    %v116 = vunpack.c.l.b16 %v37
    %v117 = vunpack.c.l.b16 %v38
    %v118 = vunpack.c.l.b16 %v39
    %v119 = vunpack.c.l.b16 %v40
    %v120 = vunpack.c.l.b16 %v41
    %v121 = vunpack.c.l.b16 %v42
    %v122 = vunpack.c.l.b16 %v43
    %v123 = vunpack.c.l.b16 %v44
    %v124 = vunpack.c.l.b16 %v45
    %v125 = vunpack.c.l.b16 %v46
    %v126 = vunpack.c.l.b16 %v47
    %v127 = vpack.c.b16 %v100, %v99
    %v128 = vpack.c.b16 %v102, %v101
    %v129 = vpack.c.b16 %v104, %v103
    %v130 = vpack.c.b16 %v106, %v105
    %v131 = vpack.c.b16 %v108, %v107
    %v132 = vpack.c.b16 %v110, %v109
    %v133 = vpack.c.b16 %v112, %v111
    %v134 = vpack.c.b16 %v114, %v113
    %v135 = vpack.c.b16 %v116, %v115
    %v136 = vpack.c.b16 %v118, %v117
    %v137 = vpack.c.b16 %v120, %v119
    %v138 = vpack.c.b16 %v122, %v121
    %v139 = vpack.c.b16 %v124, %v123
    %v140 = vpack.c.b16 %v126, %v125
    %vm155 = vcmask 785408
    %v157 = vsel %vm155, %v66, 0
    %v160 = vsel %vm155, %v68, 0
    %162 = vmatprep.subr.bf16.mxu0 0
    %163 = vmatpush1.bf16.msra.mxu0 %v127
    %164 = vmatprep.subr.bf16.mxu0 0
    %165 = vmatpush1.bf16.msra.mxu0 %v128
    %166 = vmatprep.subr.bf16.mxu0 0
    %167 = vmatpush1.bf16.msra.mxu0 %v129
    %168 = vmatprep.subr.bf16.mxu0 0
    %169 = vmatpush1.bf16.msra.mxu0 %v130
    %170 = vmatprep.subr.bf16.mxu0 0
    %171 = vmatpush1.bf16.msra.mxu0 %v131
    %172 = vmatprep.subr.bf16.mxu0 0
    %173 = vmatpush1.bf16.msra.mxu0 %v132
    %174 = vmatprep.subr.bf16.mxu0 0
    %175 = vmatpush1.bf16.msra.mxu0 %v133
    %176 = vmatprep.subr.bf16.mxu0 0
    %177 = vmatpush1.bf16.msra.mxu0 %v134
    %178 = vmatprep.subr.bf16.mxu0 0
    %179 = vmatpush1.bf16.msra.mxu0 %v135
    %180 = vmatprep.subr.bf16.mxu0 0
    %181 = vmatpush1.bf16.msra.mxu0 %v136
    %182 = vmatprep.subr.bf16.mxu0 0
    %183 = vmatpush1.bf16.msra.mxu0 %v137
    %184 = vmatprep.subr.bf16.mxu0 0
    %185 = vmatpush1.bf16.msra.mxu0 %v138
    %186 = vmatprep.subr.bf16.mxu0 0
    %187 = vmatpush1.bf16.msra.mxu0 %v139
    %188 = vmatprep.subr.bf16.mxu0 0
    %189 = vmatpush1.bf16.msra.mxu0 %v140
    %190 = vmatprep.subr.bf16.mxu0 0
    %191 = vmatpush1.bf16.msra.mxu0 0
    %192 = vmatprep.subr.bf16.mxu0 0
    %193 = vmatpush1.bf16.msra.mxu0 0
    %194 = vmatprep.mubr.bf16.mxu0 %v157
    %195 = vmatmul.mubr.bf16.gmra.mrb[0].mxu0 %v65
    %v196 = vpop.f32.mrb[0].mxu0
    %v197 = vadd.f32 %v52, %v196
    %v198 = vpop.f32.mrb[0].mxu0
    %v199 = vpop.f32.mrb[0].mxu0
    %v200 = vadd.f32 %v52, %v199
    %v201 = vpop.f32.mrb[0].mxu0
    %202 = vmatprep.mubr.bf16.mxu0 %v160
    %203 = vmatmul.mubr.bf16.gmra.mrb[0].mxu0 %v67
    %v204 = vpop.f32.mrb[0].mxu0
    %v205 = vadd.f32 %v52, %v204
    %v206 = vpop.f32.mrb[0].mxu0
    %v207 = vpop.f32.mrb[0].mxu0
    %v208 = vadd.f32 %v52, %v207
    %v209 = vpop.f32.mrb[0].mxu0
    %210 = vdwg.mxu0
    %vm211 = vcmask 261120
    %v212 = vsel %vm211, %v197, 0.0
    %213 = vadd.xlane.f32.xlu0 %v212
    %v214 = vpop.xlane.xlu0 %213
    %v215 = vsel %vm211, %v200, 0.0
    %216 = vadd.xlane.f32.xlu0 %v215
    %v217 = vpop.xlane.xlu0 %216
    %v218 = vsel %vm211, %v205, 0.0
    %219 = vadd.xlane.f32.xlu0 %v218
    %v220 = vpop.xlane.xlu0 %219
    %v221 = vsel %vm211, %v208, 0.0
    %222 = vadd.xlane.f32.xlu0 %v221
    %v223 = vpop.xlane.xlu0 %222
    %v224 = vrcp.pop 32.0
    %v225 = vmul.f32 %v214, %v224
    %v226 = vmul.f32 %v217, %v224
    %v227 = vmul.f32 %v220, %v224
    %v228 = vmul.f32 %v223, %v224
    %v229 = vsub.f32 %v197, %v225
    %v230 = vsub.f32 %v200, %v226
    %v231 = vsub.f32 %v205, %v227
    %v232 = vsub.f32 %v208, %v228
    %v233 = vmul.f32 %v229, %v229
    %v234 = vmul.f32 %v230, %v230
    %v235 = vmul.f32 %v231, %v231
    %v236 = vmul.f32 %v232, %v232
    %v237 = vsel %vm211, %v233, 0.0
    %238 = vadd.xlane.f32.xlu0 %v237
    %v239 = vpop.xlane.xlu0 %238
    %v240 = vsel %vm211, %v234, 0.0
    %241 = vadd.xlane.f32.xlu0 %v240
    %v242 = vpop.xlane.xlu0 %241
    %v243 = vsel %vm211, %v235, 0.0
    %244 = vadd.xlane.f32.xlu0 %v243
    %v245 = vpop.xlane.xlu0 %244
    %v246 = vsel %vm211, %v236, 0.0
    %247 = vadd.xlane.f32.xlu0 %v246
    %v248 = vpop.xlane.xlu0 %247
    %v249 = vmul.f32 %v239, %v224
    %v250 = vmul.f32 %v242, %v224
    %v251 = vmul.f32 %v245, %v224
    %v252 = vmul.f32 %v248, %v224
    %v253 = vadd.f32 %v249, 1e-05
    %v254 = vadd.f32 %v250, 1e-05
    %v255 = vadd.f32 %v251, 1e-05
    %v256 = vadd.f32 %v252, 1e-05
    %v257 = vrsqrt.pop %v253
    %v258 = vrsqrt.pop %v254
    %v259 = vrsqrt.pop %v255
    %v260 = vrsqrt.pop %v256
    %v261 = vmul.f32 %v229, %v257
    %v262 = vmul.f32 %v230, %v258
    %v263 = vmul.f32 %v231, %v259
    %v264 = vmul.f32 %v232, %v260
    %v265 = vld [vmem:[%s2 + $0x1] sm:$0x1]
    %v266 = vlaneseq
    %v267 = vshrl.u32 %v266, 7
    %v268 = vsub.s32 0, %v267
    %v269 = vrot.slane %v265, %v268
    %v270 = vmul.f32 %v261, %v269
    %v271 = vmul.f32 %v262, %v269
    %v272 = vmul.f32 %v263, %v269
    %v273 = vmul.f32 %v264, %v269
    %v274 = vld [vmem:[%s2 + $0x2] sm:$0x1]
    %v275 = vlaneseq
    %v276 = vshrl.u32 %v275, 7
    %v277 = vsub.s32 0, %v276
    %v278 = vrot.slane %v274, %v277
    %v279 = vadd.f32 %v270, %v278
    %v280 = vadd.f32 %v271, %v278
    %v281 = vadd.f32 %v272, %v278
    %v282 = vadd.f32 %v273, %v278
    %283 = vst.msk [vmem:[#allocation2] sm:$0xff] %vm211, %v279
    %284 = vst.msk [vmem:[#allocation2 + $0x8] sm:$0xff] %vm211, %v280
    %285 = vst.msk [vmem:[#allocation2 + $0x10] sm:$0xff] %vm211, %v281
    %286 = vst.msk [vmem:[#allocation2 + $0x18] sm:$0xff] %vm211, %v282
    // Predicated region
    $region14: #{overlap_patch_embed.1} parent=1 // pred_check
      _
    $region15: #{overlap_patch_embed.1} parent=1 // pred_check_branch
      %288 = sbr.rel (0) target = $region17
    $region16: #{overlap_patch_embed.1} parent=1 // pred_region
      %s290 = ssub.s32 512, 512
      %291 = vsyncadd [#allocation3], %s290
      %s292 = sshll.u32 [#allocation2], 4
      %s293 = int_to_ptr.vmem [resolvable:$true] %s292
      %298 = dma.vmem_to_hbm [thread:$0]  %s293, 512, %s3, [#allocation3], 128, 128, 8
    $region17: #{overlap_patch_embed.1} parent=1 // pred_fallthru
      _
    // Predicated region
    $region18: #{overlap_patch_embed.1} parent=1 // pred_check
      _
    $region19: #{overlap_patch_embed.1} parent=1 // pred_check_branch
      %300 = sbr.rel (0) target = $region21
    $region20: #{overlap_patch_embed.1} parent=1 // pred_region
      %301 = dma.done [#allocation3], 512
    $region21: #{overlap_patch_embed.1} parent=1 // pred_fallthru
      _
    %302 = vsyncpa [#allocation3], 1

</llo_original>
